<compile_context>
chip_gen: v6e
topology: v6e:2x2x1
jax: 0.10.0
libtpu: 0.0.40
codegen_flags: <defaults>
</compile_context>

<pallas_src>
import jax
import jax.numpy as jnp
import numpy as np
from jax.experimental import pallas as pl
from jax.experimental.pallas import tpu as pltpu

BN_EPS = 1e-5


def _make_pool_matrix_t(img_size, pool):
    """Transposed pooling matrix P^T of shape (H*W, Hp*Wp).

    P[(hp*Wp+wp), (h*W+w)] = 1/pool^2 inside the (hp, wp) window.  Matches
    AvgPool2d's default floor behavior: when img_size % pool != 0 the
    remainder rows/cols are simply never referenced (zero rows in P^T).
    """
    hp = img_size // pool
    p = np.zeros((hp * hp, img_size * img_size), dtype=np.float32)
    inv = 1.0 / (pool * pool)
    for i in range(hp):
        for j in range(hp):
            for di in range(pool):
                for dj in range(pool):
                    h = i * pool + di
                    w = j * pool + dj
                    p[i * hp + j, h * img_size + w] = inv
    return jnp.asarray(p.T)  # (HW, HpWp); 1/pool^2 is exact in bf16


def _make_kernel(pipe_meta, compute_dtype):
    """pipe_meta: tuple of (c_off, cout, hpwp, flat_off) per pipeline."""
    n_pipes = len(pipe_meta)

    def kernel(x_ref, wt_ref, b_ref, *rest):
        pt_refs = rest[:n_pipes]
        o_ref = rest[n_pipes]

        x = x_ref[0]  # (Cin, HW) channel-major; lane axis = HW (dense)

        # Fused 1x1 conv for ALL pipelines, BN already folded into wt:
        # (Cout_total, Cin) @ (Cin, HW) -> (Cout_total, HW), f32 accumulate.
        y = jnp.dot(wt_ref[...], x, preferred_element_type=jnp.float32)

        # Dropout: identity at inference.
        # TODO(synk): training-mode dropout (random masking) not implemented.

        for i in range(n_pipes):
            c_off, cout, hpwp, flat_off = pipe_meta[i]
            y_i = y[c_off:c_off + cout, :].astype(compute_dtype)  # (cout, HW)
            # AvgPool2d as a matmul with P^T: (cout, HW) @ (HW, HpWp).
            pooled = jnp.dot(y_i, pt_refs[i][...],
                             preferred_element_type=jnp.float32)
            # Folded conv-bias/BN-shift added AFTER pooling (each P row sums
            # to exactly 1, so avg-pool of a constant is the constant).
            pooled = pooled + b_ref[c_off:c_off + cout, :]
            # Store directly in PyTorch flatten order (c-major, then hp, wp).
            for c in range(cout):
                o_ref[0, :, pl.ds(flat_off + c * hpwp, hpwp)] = (
                    pooled[c:c + 1, :].astype(o_ref.dtype))

    return kernel


def extraction_block_forward(x_nchw, pipelines_params, pool_sizes, img_size,
                             compute_dtype=jnp.bfloat16):
    """x_nchw: (B, Cin, H, W) f32.  Returns (B, sum_i Cout*Hp_i*Wp_i) f32."""
    B, Cin, H, W = x_nchw.shape
    assert H == W == img_size
    HW = H * W

    # Channel-major, spatially flattened input: pure reshape (no transpose).
    x_flat = x_nchw.reshape(B, Cin, HW).astype(compute_dtype)

    # Fold BN (eval-mode running stats) + conv bias into the conv weight/bias
    # at trace time; concatenate all pipelines along Cout.
    wts, biases, pool_ts, meta = [], [], [], []
    c_off = 0
    flat_off = 0
    for params, pool in zip(pipelines_params, pool_sizes):
        scale = params["gamma"][0] * jax.lax.rsqrt(params["var"][0] + BN_EPS)
        w_fold = params["w"] * scale[None, :]                                   # (Cin, Cout)
        b_fold = (params["b"][0] - params["mean"][0]) * scale + params["beta"][0]  # (Cout,)
        cout = params["w"].shape[1]
        hp = img_size // pool
        hpwp = hp * hp
        wts.append(jnp.transpose(w_fold))   # (Cout, Cin)
        biases.append(b_fold)
        # TODO(synk): for large img_size replace the dense P^T (scales as
        # HW^2/pool^2, would exceed v7x's 64 MiB VMEM) with an in-kernel
        # reshape+mean pool; fine at these shapes.
        pool_ts.append(_make_pool_matrix_t(img_size, pool).astype(compute_dtype))
        meta.append((c_off, cout, hpwp, flat_off))
        c_off += cout
        flat_off += cout * hpwp
    cout_total = c_off
    total_flat = flat_off

    wt_all = jnp.concatenate(wts, axis=0).astype(compute_dtype)     # (Cout_total, Cin)
    b_all = jnp.concatenate(biases, axis=0).reshape(cout_total, 1)  # f32, post-pool add

    kernel = _make_kernel(tuple(meta), compute_dtype)

    elem = jnp.dtype(compute_dtype).itemsize
    flops = B * (2 * cout_total * Cin * HW
                 + sum(2 * m[1] * HW * m[2] for m in meta))
    bytes_accessed = (B * Cin * HW * elem
                      + cout_total * Cin * elem
                      + cout_total * 4
                      + sum(HW * m[2] * elem for m in meta)
                      + B * total_flat * 4)

    out = pl.pallas_call(
        kernel,
        out_shape=jax.ShapeDtypeStruct((B, 1, total_flat), jnp.float32),
        grid_spec=pltpu.PrefetchScalarGridSpec(
            num_scalar_prefetch=0,
            grid=(B,),
            in_specs=[
                pl.BlockSpec((1, Cin, HW), lambda b: (b, 0, 0)),         # x
                pl.BlockSpec((cout_total, Cin), lambda b: (0, 0)),       # W^T (folded)
                pl.BlockSpec((cout_total, 1), lambda b: (0, 0)),         # b (folded)
            ] + [pl.BlockSpec((HW, m[2]), lambda b: (0, 0)) for m in meta],
            out_specs=pl.BlockSpec((1, 1, total_flat), lambda b: (b, 0, 0)),
        ),
        compiler_params=pltpu.CompilerParams(
            dimension_semantics=("parallel",)),
        cost_estimate=pl.CostEstimate(flops=int(flops), transcendentals=0,
                                      bytes_accessed=int(bytes_accessed)),
    )(x_flat, wt_all, b_all, *pool_ts)

    # (B, 1, total_flat) -> (B, total_flat): free squeeze, already in PyTorch
    # flatten-and-concat order.
    return out.reshape(B, total_flat)


def init_pipeline_params(key, in_filters, p_comp):
    """Deterministic synthetic params matching ConcentrationPipeline shapes."""
    cout = in_filters // p_comp
    k = jax.random.split(key, 6)
    w = jax.random.normal(k[0], (in_filters, cout), jnp.float32) * 0.1   # (Cin, Cout)
    b = jax.random.normal(k[1], (1, cout), jnp.float32) * 0.1
    gamma = 1.0 + 0.1 * jax.random.normal(k[2], (1, cout), jnp.float32)
    beta = 0.1 * jax.random.normal(k[3], (1, cout), jnp.float32)
    mean = 0.1 * jax.random.normal(k[4], (1, cout), jnp.float32)
    var = jnp.abs(jax.random.normal(k[5], (1, cout), jnp.float32)) * 0.5 + 0.5
    return {"w": w, "b": b, "gamma": gamma, "beta": beta, "mean": mean, "var": var}


def _reference_forward(x_nchw, pipelines_params, pool_sizes):
    """Pure-JAX f32 reference matching the PyTorch module (eval mode)."""
    B, Cin, H, W = x_nchw.shape
    outs = []
    for params, pool in zip(pipelines_params, pool_sizes):
        y = jnp.einsum("bchw,co->bohw", x_nchw, params["w"]) \
            + params["b"][0][None, :, None, None]
        inv = 1.0 / jnp.sqrt(params["var"][0] + BN_EPS)
        y = (y - params["mean"][0][None, :, None, None]) * inv[None, :, None, None]
        y = y * params["gamma"][0][None, :, None, None] + params["beta"][0][None, :, None, None]
        hp, wp = H // pool, W // pool
        y = y[:, :, :hp * pool, :wp * pool].reshape(B, -1, hp, pool, wp, pool).mean(axis=(3, 5))
        outs.append(y.reshape(B, -1))
    return jnp.concatenate(outs, axis=1)


if __name__ == "__main__":
    batch = 2
    in_filters = 16
    img_size = 16
    p_comp = 4
    pool_sizes = [2, 4]
    p_drop = 0.3  # unused at inference

    key = jax.random.PRNGKey(0)
    kx, kp = jax.random.split(key)
    x = jax.random.normal(kx, (batch, in_filters, img_size, img_size), jnp.float32)

    pipe_keys = jax.random.split(kp, len(pool_sizes))
    pipelines_params = [init_pipeline_params(k, in_filters, p_comp) for k in pipe_keys]

    out = extraction_block_forward(x, pipelines_params, pool_sizes, img_size)
    out = jax.block_until_ready(out)

    ref = _reference_forward(x, pipelines_params, pool_sizes)
    # bf16 matmul inputs with f32 accumulation -> loose-ish tolerance.
    np.testing.assert_allclose(np.asarray(out), np.asarray(ref), rtol=2e-2, atol=2e-2)

    expected_dim = sum((in_filters // p_comp) * (img_size // p) ** 2 for p in pool_sizes)
    assert out.shape == (batch, expected_dim), out.shape

    print("KERNEL_OK")
</pallas_src>

<mosaic_0001>
module attributes {stable_mosaic.version = 11 : i64} {
  func.func @kernel(%arg0: i32, %arg1: memref<1x16x256xbf16, #tpu.memory_space<vmem>>, %arg2: memref<8x16xbf16, #tpu.memory_space<vmem>>, %arg3: memref<8x1xf32, #tpu.memory_space<vmem>>, %arg4: memref<256x64xbf16, #tpu.memory_space<vmem>>, %arg5: memref<256x16xbf16, #tpu.memory_space<vmem>>, %arg6: memref<1x1x320xf32, #tpu.memory_space<vmem>>) attributes {dimension_semantics = [#tpu.dimension_semantics<parallel>], iteration_bounds = array<i64: 2>, scalar_prefetch = 0 : i64, scratch_operands = 0 : i64, tpu.core_type = #tpu.core_type<tc>, window_params = [{transform_indices = @transform_0, window_bounds = array<i64: 1, 16, 256>}, {pipeline_mode = #tpu.pipeline_mode<synchronous>, transform_indices = @transform_1, window_bounds = array<i64: 8, 16>}, {pipeline_mode = #tpu.pipeline_mode<synchronous>, transform_indices = @transform_2, window_bounds = array<i64: 8, 1>}, {pipeline_mode = #tpu.pipeline_mode<synchronous>, transform_indices = @transform_3, window_bounds = array<i64: 256, 64>}, {pipeline_mode = #tpu.pipeline_mode<synchronous>, transform_indices = @transform_4, window_bounds = array<i64: 256, 16>}, {transform_indices = @transform_5, window_bounds = array<i64: 1, 1, 320>}]} {
    %c0 = arith.constant 0 : index
    %c0_0 = arith.constant 0 : index
    %c0_1 = arith.constant 0 : index
    %0 = vector.load %arg1[%c0, %c0_0, %c0_1] : memref<1x16x256xbf16, #tpu.memory_space<vmem>>, vector<1x16x256xbf16>
    %1 = vector.shape_cast %0 : vector<1x16x256xbf16> to vector<16x256xbf16>
    %c0_2 = arith.constant 0 : index
    %c0_3 = arith.constant 0 : index
    %2 = vector.load %arg2[%c0_2, %c0_3] : memref<8x16xbf16, #tpu.memory_space<vmem>>, vector<8x16xbf16>
    %cst = arith.constant dense<0.000000e+00> : vector<8x256xf32>
    %3 = tpu.matmul %2, %1, %cst {dimension_numbers = #tpu.dot_dimension_numbers<[1], [0], [0], [1], [0, 0, 1, 1], [], []>} : vector<8x16xbf16>, vector<16x256xbf16>, vector<8x256xf32> -> vector<8x256xf32>
    %4 = vector.extract_strided_slice %3 {offsets = [0, 0], sizes = [4, 256], strides = [1, 1]} : vector<8x256xf32> to vector<4x256xf32>
    %5 = arith.truncf %4 : vector<4x256xf32> to vector<4x256xbf16>
    %c0_4 = arith.constant 0 : index
    %c0_5 = arith.constant 0 : index
    %6 = vector.load %arg4[%c0_4, %c0_5] : memref<256x64xbf16, #tpu.memory_space<vmem>>, vector<256x64xbf16>
    %cst_6 = arith.constant dense<0.000000e+00> : vector<4x64xf32>
    %7 = tpu.matmul %5, %6, %cst_6 {dimension_numbers = #tpu.dot_dimension_numbers<[1], [0], [0], [1], [0, 0, 1, 1], [], []>} : vector<4x256xbf16>, vector<256x64xbf16>, vector<4x64xf32> -> vector<4x64xf32>
    %c0_7 = arith.constant 0 : index
    %c0_8 = arith.constant 0 : index
    %8 = vector.load %arg3[%c0_7, %c0_8] : memref<8x1xf32, #tpu.memory_space<vmem>>, vector<4x1xf32>
    %9 = vector.broadcast %8 : vector<4x1xf32> to vector<4x64xf32>
    %10 = arith.addf %7, %9 : vector<4x64xf32>
    %11 = vector.extract_strided_slice %10 {offsets = [0, 0], sizes = [1, 64], strides = [1, 1]} : vector<4x64xf32> to vector<1x64xf32>
    %c0_9 = arith.constant 0 : index
    %c0_10 = arith.constant 0 : index
    %c0_11 = arith.constant 0 : index
    %12 = vector.load %arg6[%c0_9, %c0_10, %c0_11] : memref<1x1x320xf32, #tpu.memory_space<vmem>>, vector<1x1x64xf32>
    %13 = vector.shape_cast %12 : vector<1x1x64xf32> to vector<1x64xf32>
    %14 = vector.shape_cast %11 : vector<1x64xf32> to vector<1x1x64xf32>
    tpu.vector_store %arg6[%c0_9, %c0_10, %c0_11], %14 {strides = array<i32>} : memref<1x1x320xf32, #tpu.memory_space<vmem>>, vector<1x1x64xf32>,
    %15 = vector.extract_strided_slice %10 {offsets = [1, 0], sizes = [1, 64], strides = [1, 1]} : vector<4x64xf32> to vector<1x64xf32>
    %c0_12 = arith.constant 0 : index
    %c0_13 = arith.constant 0 : index
    %c64 = arith.constant 64 : index
    %16 = vector.load %arg6[%c0_12, %c0_13, %c64] : memref<1x1x320xf32, #tpu.memory_space<vmem>>, vector<1x1x64xf32>
    %17 = vector.shape_cast %16 : vector<1x1x64xf32> to vector<1x64xf32>
    %18 = vector.shape_cast %15 : vector<1x64xf32> to vector<1x1x64xf32>
    tpu.vector_store %arg6[%c0_12, %c0_13, %c64], %18 {strides = array<i32>} : memref<1x1x320xf32, #tpu.memory_space<vmem>>, vector<1x1x64xf32>,
    %19 = vector.extract_strided_slice %10 {offsets = [2, 0], sizes = [1, 64], strides = [1, 1]} : vector<4x64xf32> to vector<1x64xf32>
    %c0_14 = arith.constant 0 : index
    %c0_15 = arith.constant 0 : index
    %c128 = arith.constant 128 : index
    %20 = vector.load %arg6[%c0_14, %c0_15, %c128] : memref<1x1x320xf32, #tpu.memory_space<vmem>>, vector<1x1x64xf32>
    %21 = vector.shape_cast %20 : vector<1x1x64xf32> to vector<1x64xf32>
    %22 = vector.shape_cast %19 : vector<1x64xf32> to vector<1x1x64xf32>
    tpu.vector_store %arg6[%c0_14, %c0_15, %c128], %22 {strides = array<i32>} : memref<1x1x320xf32, #tpu.memory_space<vmem>>, vector<1x1x64xf32>,
    %23 = vector.extract_strided_slice %10 {offsets = [3, 0], sizes = [1, 64], strides = [1, 1]} : vector<4x64xf32> to vector<1x64xf32>
    %c0_16 = arith.constant 0 : index
    %c0_17 = arith.constant 0 : index
    %c192 = arith.constant 192 : index
    %24 = vector.load %arg6[%c0_16, %c0_17, %c192] : memref<1x1x320xf32, #tpu.memory_space<vmem>>, vector<1x1x64xf32>
    %25 = vector.shape_cast %24 : vector<1x1x64xf32> to vector<1x64xf32>
    %26 = vector.shape_cast %23 : vector<1x64xf32> to vector<1x1x64xf32>
    tpu.vector_store %arg6[%c0_16, %c0_17, %c192], %26 {strides = array<i32>} : memref<1x1x320xf32, #tpu.memory_space<vmem>>, vector<1x1x64xf32>,
    %27 = vector.extract_strided_slice %3 {offsets = [4, 0], sizes = [4, 256], strides = [1, 1]} : vector<8x256xf32> to vector<4x256xf32>
    %28 = arith.truncf %27 : vector<4x256xf32> to vector<4x256xbf16>
    %c0_18 = arith.constant 0 : index
    %c0_19 = arith.constant 0 : index
    %29 = vector.load %arg5[%c0_18, %c0_19] : memref<256x16xbf16, #tpu.memory_space<vmem>>, vector<256x16xbf16>
    %cst_20 = arith.constant dense<0.000000e+00> : vector<4x16xf32>
    %30 = tpu.matmul %28, %29, %cst_20 {dimension_numbers = #tpu.dot_dimension_numbers<[1], [0], [0], [1], [0, 0, 1, 1], [], []>} : vector<4x256xbf16>, vector<256x16xbf16>, vector<4x16xf32> -> vector<4x16xf32>
    %c4 = arith.constant 4 : index
    %c0_21 = arith.constant 0 : index
    %31 = vector.load %arg3[%c4, %c0_21] : memref<8x1xf32, #tpu.memory_space<vmem>>, vector<4x1xf32>
    %32 = vector.broadcast %31 : vector<4x1xf32> to vector<4x16xf32>
    %33 = arith.addf %30, %32 : vector<4x16xf32>
    %34 = vector.extract_strided_slice %33 {offsets = [0, 0], sizes = [1, 16], strides = [1, 1]} : vector<4x16xf32> to vector<1x16xf32>
    %c0_22 = arith.constant 0 : index
    %c0_23 = arith.constant 0 : index
    %c256 = arith.constant 256 : index
    %35 = vector.load %arg6[%c0_22, %c0_23, %c256] : memref<1x1x320xf32, #tpu.memory_space<vmem>>, vector<1x1x16xf32>
    %36 = vector.shape_cast %35 : vector<1x1x16xf32> to vector<1x16xf32>
    %37 = vector.shape_cast %34 : vector<1x16xf32> to vector<1x1x16xf32>
    tpu.vector_store %arg6[%c0_22, %c0_23, %c256], %37 {strides = array<i32>} : memref<1x1x320xf32, #tpu.memory_space<vmem>>, vector<1x1x16xf32>,
    %38 = vector.extract_strided_slice %33 {offsets = [1, 0], sizes = [1, 16], strides = [1, 1]} : vector<4x16xf32> to vector<1x16xf32>
    %c0_24 = arith.constant 0 : index
    %c0_25 = arith.constant 0 : index
    %c272 = arith.constant 272 : index
    %39 = vector.load %arg6[%c0_24, %c0_25, %c272] : memref<1x1x320xf32, #tpu.memory_space<vmem>>, vector<1x1x16xf32>
    %40 = vector.shape_cast %39 : vector<1x1x16xf32> to vector<1x16xf32>
    %41 = vector.shape_cast %38 : vector<1x16xf32> to vector<1x1x16xf32>
    tpu.vector_store %arg6[%c0_24, %c0_25, %c272], %41 {strides = array<i32>} : memref<1x1x320xf32, #tpu.memory_space<vmem>>, vector<1x1x16xf32>,
    %42 = vector.extract_strided_slice %33 {offsets = [2, 0], sizes = [1, 16], strides = [1, 1]} : vector<4x16xf32> to vector<1x16xf32>
    %c0_26 = arith.constant 0 : index
    %c0_27 = arith.constant 0 : index
    %c288 = arith.constant 288 : index
    %43 = vector.load %arg6[%c0_26, %c0_27, %c288] : memref<1x1x320xf32, #tpu.memory_space<vmem>>, vector<1x1x16xf32>
    %44 = vector.shape_cast %43 : vector<1x1x16xf32> to vector<1x16xf32>
    %45 = vector.shape_cast %42 : vector<1x16xf32> to vector<1x1x16xf32>
    tpu.vector_store %arg6[%c0_26, %c0_27, %c288], %45 {strides = array<i32>} : memref<1x1x320xf32, #tpu.memory_space<vmem>>, vector<1x1x16xf32>,
    %46 = vector.extract_strided_slice %33 {offsets = [3, 0], sizes = [1, 16], strides = [1, 1]} : vector<4x16xf32> to vector<1x16xf32>
    %c0_28 = arith.constant 0 : index
    %c0_29 = arith.constant 0 : index
    %c304 = arith.constant 304 : index
    %47 = vector.load %arg6[%c0_28, %c0_29, %c304] : memref<1x1x320xf32, #tpu.memory_space<vmem>>, vector<1x1x16xf32>
    %48 = vector.shape_cast %47 : vector<1x1x16xf32> to vector<1x16xf32>
    %49 = vector.shape_cast %46 : vector<1x16xf32> to vector<1x1x16xf32>
    tpu.vector_store %arg6[%c0_28, %c0_29, %c304], %49 {strides = array<i32>} : memref<1x1x320xf32, #tpu.memory_space<vmem>>, vector<1x1x16xf32>,
    return
  }
  func.func @transform_0(%arg0: i32) -> (i32, i32, i32) {
    %c0_i32 = arith.constant 0 : i32
    %c0_i32_0 = arith.constant 0 : i32
    %c0_i32_1 = arith.constant 0 : i32
    return %arg0, %c0_i32, %c0_i32_0 : i32, i32, i32
  }
  func.func @transform_1(%arg0: i32) -> (i32, i32) {
    %c0_i32 = arith.constant 0 : i32
    %c0_i32_0 = arith.constant 0 : i32
    %c0_i32_1 = arith.constant 0 : i32
    return %c0_i32, %c0_i32_0 : i32, i32
  }
  func.func @transform_2(%arg0: i32) -> (i32, i32) {
    %c0_i32 = arith.constant 0 : i32
    %c0_i32_0 = arith.constant 0 : i32
    %c0_i32_1 = arith.constant 0 : i32
    return %c0_i32, %c0_i32_0 : i32, i32
  }
  func.func @transform_3(%arg0: i32) -> (i32, i32) {
    %c0_i32 = arith.constant 0 : i32
    %c0_i32_0 = arith.constant 0 : i32
    %c0_i32_1 = arith.constant 0 : i32
    return %c0_i32, %c0_i32_0 : i32, i32
  }
  func.func @transform_4(%arg0: i32) -> (i32, i32) {
    %c0_i32 = arith.constant 0 : i32
    %c0_i32_0 = arith.constant 0 : i32
    %c0_i32_1 = arith.constant 0 : i32
    return %c0_i32, %c0_i32_0 : i32, i32
  }
  func.func @transform_5(%arg0: i32) -> (i32, i32, i32) {
    %c0_i32 = arith.constant 0 : i32
    %c0_i32_0 = arith.constant 0 : i32
    %c0_i32_1 = arith.constant 0 : i32
    return %arg0, %c0_i32, %c0_i32_0 : i32, i32, i32
  }
}

</mosaic_0001>

<llo_original>
// kernel: tpu_custom_call.1
$region0: #{tpu_custom_call.1}
  #allocation0 [shape = 'u32[]', space=smem, size = 0x4, offset = 0x4, fixed_abs, tag = 'smem constant byte address 0x4 - core index']
  #allocation1 [shape = 'u32[144,128]{1,0:T(1,128)}', space=vmem, size = 0x12000, scoped, tag = 'internal scratch']
  %s0 = inlined_call_operand.vmem [shape: bf16[2,16,256], index: 0, kind: input, shape index: {}]
  %s1 = inlined_call_operand.vmem [shape: bf16[8,16], index: 1, kind: input, shape index: {}]
  %s2 = inlined_call_operand.vmem [shape: f32[8,1], index: 2, kind: input, shape index: {}]
  %s3 = inlined_call_operand.vmem [shape: bf16[256,64], index: 3, kind: input, shape index: {}]
  %s4 = inlined_call_operand.vmem [shape: bf16[256,16], index: 4, kind: input, shape index: {}]
  %s5 = inlined_call_operand.hbm [shape: f32[2,1,320], index: 5, kind: output, shape index: {}]
  %s6 = sld [smem:[#allocation0]]
  $region53: #{tpu_custom_call.1} parent=0
    _
  %s8 = ssub.s32 1, %s6
  %s9 = scalar_select 0, %s8, %s6
  $region1: #{tpu_custom_call.1} parent=0
    #allocation2 [shape = 'u8[3072]{0}', space=vmem, size = 0xc00, scoped, tag = 'output window, operand 0']
    #allocation3 [shape = 's32[2]{0}', space=sflag, size = 0x8, scoped, tag = 'scoped memory for tpu_custom_call.1']
    %10 = vsyncpa [#allocation3], 0
    %s11 = scalar_lea.sflag [#allocation3], 1
    %12 = vsyncpa %s11, 0
    loop: start=0, step=1, limit=4
    $region2: #{tpu_custom_call.1} parent=1 // loop_pre_header
      _
    $region3: #{tpu_custom_call.1} parent=1 // loop_header
      %s14 = sphi 0, %s18
      %p15 = scmp.ge.s32.totalorder %s14, 4
      %s24 = sphi 0, %s26
      %s27 = sphi 0, %s24
      %s28 = sphi 0, %s27
      %s44 = sphi 0, %s28
      %s48 = sphi 0, %s48
      %s50 = sphi 0, %s48
      %s51 = sphi 0, %s50
      %s65 = sphi 0, %s51
      %s69 = sphi 0, %s69
      %s71 = sphi 0, %s69
      %s72 = sphi 0, %s71
      %s86 = sphi 0, %s72
      %s90 = sphi 0, %s90
      %s92 = sphi 0, %s90
      %s93 = sphi 0, %s92
      %s107 = sphi 0, %s93
      %s111 = sphi 0, %s111
      %s113 = sphi 0, %s111
      %s114 = sphi 0, %s113
      %s128 = sphi 0, %s114
      %s134 = sphi 0, %s136
      %s137 = sphi 0, %s134
      %s138 = sphi 0, %s137
      %s154 = sphi 0, %s138
    $region4: #{tpu_custom_call.1} parent=1 // loop_header_branch
      %17 = sbr.rel (%p15) target = $region8
    $region5: #{tpu_custom_call.1} parent=1 // loop_body
      %s19 = ssub.s32 %s14, 1
      %s20 = ssub.s32 %s14, 2
      %s21 = sadd.s32 %s14, 1
      %s22 = ssub.s32 %s14, %s21
      %p23 = scmp.eq.s32.totalorder %s22, 0
      %s25 = sadd.s32 %s24, 1
      %s26 = scalar_select %p23, %s24, %s25
      %p29 = pneg %p23
      %p30 = scmp.eq.s32.totalorder %s14, 1
      %p31 = por %p29, %p30
      %p32 = scmp.ne.s32.totalorder %s24, %s27
      %p33 = scmp.eq.s32.totalorder %s14, 0
      %p34 = por %p32, %p33
      %p35 = scmp.ne.s32.totalorder %s24, %s27
      %p36 = scmp.eq.s32.totalorder %s19, 1
      %p37 = por %p35, %p36
      %p38 = scmp.ne.s32.totalorder %s27, %s28
      %p39 = scmp.eq.s32.totalorder %s19, 0
      %p40 = por %p38, %p39
      %p41 = scmp.ne.s32.totalorder %s27, %s28
      %p42 = scmp.eq.s32.totalorder %s20, 1
      %p43 = por %p41, %p42
      %p45 = scmp.ne.s32.totalorder %s28, %s44
      %p46 = scmp.eq.s32.totalorder %s20, 0
      %p47 = por %p45, %p46
      %s49 = sadd.s32 %s48, 1
      %p52 = scmp.eq.s32.totalorder %s14, 1
      %p53 = scmp.ne.s32.totalorder %s48, %s50
      %p54 = scmp.eq.s32.totalorder %s14, 0
      %p55 = por %p53, %p54
      %p56 = scmp.ne.s32.totalorder %s48, %s50
      %p57 = scmp.eq.s32.totalorder %s19, 1
      %p58 = por %p56, %p57
      %p59 = scmp.ne.s32.totalorder %s50, %s51
      %p60 = scmp.eq.s32.totalorder %s19, 0
      %p61 = por %p59, %p60
      %p62 = scmp.ne.s32.totalorder %s50, %s51
      %p63 = scmp.eq.s32.totalorder %s20, 1
      %p64 = por %p62, %p63
      %p66 = scmp.ne.s32.totalorder %s51, %s65
      %p67 = scmp.eq.s32.totalorder %s20, 0
      %p68 = por %p66, %p67
      %s70 = sadd.s32 %s69, 1
      %p73 = scmp.eq.s32.totalorder %s14, 1
      %p74 = scmp.ne.s32.totalorder %s69, %s71
      %p75 = scmp.eq.s32.totalorder %s14, 0
      %p76 = por %p74, %p75
      %p77 = scmp.ne.s32.totalorder %s69, %s71
      %p78 = scmp.eq.s32.totalorder %s19, 1
      %p79 = por %p77, %p78
      %p80 = scmp.ne.s32.totalorder %s71, %s72
      %p81 = scmp.eq.s32.totalorder %s19, 0
      %p82 = por %p80, %p81
      %p83 = scmp.ne.s32.totalorder %s71, %s72
      %p84 = scmp.eq.s32.totalorder %s20, 1
      %p85 = por %p83, %p84
      %p87 = scmp.ne.s32.totalorder %s72, %s86
      %p88 = scmp.eq.s32.totalorder %s20, 0
      %p89 = por %p87, %p88
      %s91 = sadd.s32 %s90, 1
      %p94 = scmp.eq.s32.totalorder %s14, 1
      %p95 = scmp.ne.s32.totalorder %s90, %s92
      %p96 = scmp.eq.s32.totalorder %s14, 0
      %p97 = por %p95, %p96
      %p98 = scmp.ne.s32.totalorder %s90, %s92
      %p99 = scmp.eq.s32.totalorder %s19, 1
      %p100 = por %p98, %p99
      %p101 = scmp.ne.s32.totalorder %s92, %s93
      %p102 = scmp.eq.s32.totalorder %s19, 0
      %p103 = por %p101, %p102
      %p104 = scmp.ne.s32.totalorder %s92, %s93
      %p105 = scmp.eq.s32.totalorder %s20, 1
      %p106 = por %p104, %p105
      %p108 = scmp.ne.s32.totalorder %s93, %s107
      %p109 = scmp.eq.s32.totalorder %s20, 0
      %p110 = por %p108, %p109
      %s112 = sadd.s32 %s111, 1
      %p115 = scmp.eq.s32.totalorder %s14, 1
      %p116 = scmp.ne.s32.totalorder %s111, %s113
      %p117 = scmp.eq.s32.totalorder %s14, 0
      %p118 = por %p116, %p117
      %p119 = scmp.ne.s32.totalorder %s111, %s113
      %p120 = scmp.eq.s32.totalorder %s19, 1
      %p121 = por %p119, %p120
      %p122 = scmp.ne.s32.totalorder %s113, %s114
      %p123 = scmp.eq.s32.totalorder %s19, 0
      %p124 = por %p122, %p123
      %p125 = scmp.ne.s32.totalorder %s113, %s114
      %p126 = scmp.eq.s32.totalorder %s20, 1
      %p127 = por %p125, %p126
      %p129 = scmp.ne.s32.totalorder %s114, %s128
      %p130 = scmp.eq.s32.totalorder %s20, 0
      %p131 = por %p129, %p130
      %s132 = ssub.s32 %s14, %s21
      %p133 = scmp.eq.s32.totalorder %s132, 0
      %s135 = sadd.s32 %s134, 1
      %s136 = scalar_select %p133, %s134, %s135
      %p139 = pneg %p133
      %p140 = scmp.eq.s32.totalorder %s14, 1
      %p141 = por %p139, %p140
      %p142 = scmp.ne.s32.totalorder %s134, %s137
      %p143 = scmp.eq.s32.totalorder %s14, 0
      %p144 = por %p142, %p143
      %p145 = scmp.ne.s32.totalorder %s134, %s137
      %p146 = scmp.eq.s32.totalorder %s19, 1
      %p147 = por %p145, %p146
      %p148 = scmp.ne.s32.totalorder %s137, %s138
      %p149 = scmp.eq.s32.totalorder %s19, 0
      %p150 = por %p148, %p149
      %p151 = scmp.ne.s32.totalorder %s137, %s138
      %p152 = scmp.eq.s32.totalorder %s20, 1
      %p153 = por %p151, %p152
      %p155 = scmp.ne.s32.totalorder %s138, %s154
      %p156 = scmp.eq.s32.totalorder %s20, 0
      %p157 = por %p155, %p156
      %p158 = scmp.le.s32.totalorder 1, %s14
      %p159 = scmp.lt.s32.totalorder %s14, 3
      %p160 = pnand %p158, %p159
      %p161 = pneg %p160
      // Predicated region
      $region9: #{tpu_custom_call.1} parent=5 // pred_check
        _
      $region10: #{tpu_custom_call.1} parent=5 // pred_check_branch
        %163 = sbr.rel (%p160) target = $region12
      $region11: #{tpu_custom_call.1} parent=5 // pred_region
        %s164 = ssub.s32 %s14, 1
        // Predicated region
        $region13: #{tpu_custom_call.1} parent=11 // pred_check
          %p165 = pneg %p61
        $region14: #{tpu_custom_call.1} parent=11 // pred_check_branch
          %167 = sbr.rel (%p165) target = $region16
        $region15: #{tpu_custom_call.1} parent=11 // pred_region
          _
        $region16: #{tpu_custom_call.1} parent=11 // pred_fallthru
          _
        // Predicated region
        $region17: #{tpu_custom_call.1} parent=11 // pred_check
          %p168 = pneg %p82
        $region18: #{tpu_custom_call.1} parent=11 // pred_check_branch
          %170 = sbr.rel (%p168) target = $region20
        $region19: #{tpu_custom_call.1} parent=11 // pred_region
          _
        $region20: #{tpu_custom_call.1} parent=11 // pred_fallthru
          _
        // Predicated region
        $region21: #{tpu_custom_call.1} parent=11 // pred_check
          %p171 = pneg %p103
        $region22: #{tpu_custom_call.1} parent=11 // pred_check_branch
          %173 = sbr.rel (%p171) target = $region24
        $region23: #{tpu_custom_call.1} parent=11 // pred_region
          _
        $region24: #{tpu_custom_call.1} parent=11 // pred_fallthru
          _
        // Predicated region
        $region25: #{tpu_custom_call.1} parent=11 // pred_check
          %p174 = pneg %p124
        $region26: #{tpu_custom_call.1} parent=11 // pred_check_branch
          %176 = sbr.rel (%p174) target = $region28
        $region27: #{tpu_custom_call.1} parent=11 // pred_region
          _
        $region28: #{tpu_custom_call.1} parent=11 // pred_fallthru
          _
      $region12: #{tpu_custom_call.1} parent=5 // pred_fallthru
        _
      %p177 = scmp.lt.s32.totalorder %s14, 2
      // Predicated region
      $region29: #{tpu_custom_call.1} parent=5 // pred_check
        %p178 = pneg %p177
      $region30: #{tpu_custom_call.1} parent=5 // pred_check_branch
        %180 = sbr.rel (%p178) target = $region32
      $region31: #{tpu_custom_call.1} parent=5 // pred_region
        // Predicated region
        $region33: #{tpu_custom_call.1} parent=31 // pred_check
          %p181 = pneg %p34
        $region34: #{tpu_custom_call.1} parent=31 // pred_check_branch
          %183 = sbr.rel (%p181) target = $region36
        $region35: #{tpu_custom_call.1} parent=31 // pred_region
          %p184 = scmp.lt.s32.totalorder %s14, 1
          %s185 = scalar_select %p184, %s14, 1
          %s186 = smul.addr %s185, 4
          %s187 = smul.addr %s186, 4
          %s188 = scalar_lea.vmem %s0, %s187
        $region36: #{tpu_custom_call.1} parent=31 // pred_fallthru
          _
      $region32: #{tpu_custom_call.1} parent=5 // pred_fallthru
        _
      %p189 = scmp.le.s32.totalorder 1, %s14
      %p190 = scmp.lt.s32.totalorder %s14, 3
      %p191 = pnand %p189, %p190
      %p192 = pneg %p191
      // Predicated region
      $region37: #{tpu_custom_call.1} parent=5 // pred_check
        _
      $region38: #{tpu_custom_call.1} parent=5 // pred_check_branch
        %194 = sbr.rel (%p191) target = $region40
      $region39: #{tpu_custom_call.1} parent=5 // pred_region
        %s195 = ssub.s32 %s14, 1
        %p196 = scmp.lt.s32.totalorder %s19, 1
        %s197 = scalar_select %p196, %s19, 1
        %s198 = smul.addr %s197, 4
        %s199 = smul.addr %s198, 4
        %s200 = scalar_lea.vmem %s0, %s199
        %p201 = pneg %p40
        %p202 = pneg %p37
        %p203 = pneg %p61
        %p204 = pneg %p58
        %p205 = pneg %p82
        %p206 = pneg %p79
        %p207 = pneg %p103
        %p208 = pneg %p100
        %p209 = pneg %p124
        %p210 = pneg %p121
        %p211 = pneg %p150
        %p212 = pneg %p147
        %s213 = sand.u32 %s137, 1
        %s214 = scalar_lea.sflag [#allocation3], %s213
        %s215 = sand.u32 %s137, 1
        %s216 = smul.addr %s215, 3
        %s217 = scalar_lea.vmem [#allocation2], %s216
        %p218 = scmp.lt.s32.totalorder %s19, 1
        %s219 = scalar_select %p218, %s19, 1
        %s220 = smul.addr %s219, 4
        %s221 = smul.addr %s220, 4
        %s222 = scalar_lea.vmem %s0, %s221
        %v224 = vld [vmem:[%s222] sm:$0xff]
        %v225 = vld [vmem:[%s222 + $0x8] sm:$0xff]
        %v226 = vld [vmem:[%s1] sm:$0xf]
        %v229 = vunpack.c.l.b16 %v224
        %v230 = vunpack.c.h.b16 %v224
        %v231 = vunpack.c.l.b16 %v225
        %v232 = vunpack.c.h.b16 %v225
        %v233 = vpack.c.b16 %v231, %v229
        %v234 = vpack.c.b16 %v232, %v230
        %vm237 = vcmask 130048
        %v239 = vsel %vm237, %v226, 0
        %241 = vmatprep.subr.bf16.mxu0 0
        %242 = vmatpush1.bf16.msra.mxu0 0
        %243 = vmatprep.subr.bf16.mxu0 0
        %244 = vmatpush1.bf16.msra.mxu0 0
        %245 = vmatprep.subr.bf16.mxu0 0
        %246 = vmatpush1.bf16.msra.mxu0 0
        %247 = vmatprep.subr.bf16.mxu0 0
        %248 = vmatpush1.bf16.msra.mxu0 0
        %249 = vmatprep.subr.bf16.mxu0 0
        %250 = vmatpush1.bf16.msra.mxu0 0
        %251 = vmatprep.subr.bf16.mxu0 0
        %252 = vmatpush1.bf16.msra.mxu0 0
        %253 = vmatprep.subr.bf16.mxu0 0
        %254 = vmatpush1.bf16.msra.mxu0 0
        %255 = vmatprep.subr.bf16.mxu0 %v234
        %256 = vmatpush1.bf16.msra.mxu0 %v233
        %257 = vmatprep.subr.bf16.mxu0 0
        %258 = vmatpush2.bf16.msra.mxu0 0
        %259 = vmatprep.subr.bf16.mxu0 0
        %260 = vmatpush2.bf16.msra.mxu0 0
        %261 = vmatprep.subr.bf16.mxu0 0
        %262 = vmatpush2.bf16.msra.mxu0 0
        %263 = vmatprep.subr.bf16.mxu0 0
        %264 = vmatpush2.bf16.msra.mxu0 0
        %265 = vmatprep.subr.bf16.mxu0 0
        %266 = vmatpush2.bf16.msra.mxu0 0
        %267 = vmatprep.subr.bf16.mxu0 0
        %268 = vmatpush2.bf16.msra.mxu0 0
        %269 = vmatprep.subr.bf16.mxu0 0
        %270 = vmatpush2.bf16.msra.mxu0 0
        %271 = vmatprep.subr.bf16.mxu0 0
        %272 = vmatpush2.bf16.msra.mxu0 0
        %273 = vmatprep.mubr.bf16.mxu0 0
        %274 = vmatmul.mubr.bf16.gmra.mxu0 %v239
        %v275 = vpop.f32.mrf.mxu0
        %v276 = vadd.f32 0.0, %v275
        %v277 = vpop.f32.mrf.mxu0
        %v278 = vadd.f32 0.0, %v277
        %v279 = vpop.f32.mrf.mxu0
        %v280 = vpop.f32.mrf.mxu0
        %281 = vdwg.mxu0
        %v282 = vpack.c.bf16 %v276, %v276
        %v283 = vpack.c.bf16 %v278, %v278
        %v284 = vld [vmem:[%s3] sm:$0xf]
        %v285 = vld [vmem:[%s3 + $0x4] sm:$0xf]
        %v286 = vld [vmem:[%s3 + $0x8] sm:$0xf]
        %v287 = vld [vmem:[%s3 + $0xc] sm:$0xf]
        %v288 = vld [vmem:[%s3 + $0x10] sm:$0xf]
        %v289 = vld [vmem:[%s3 + $0x14] sm:$0xf]
        %v290 = vld [vmem:[%s3 + $0x18] sm:$0xf]
        %v291 = vld [vmem:[%s3 + $0x1c] sm:$0xf]
        %v292 = vld [vmem:[%s3 + $0x20] sm:$0xf]
        %v293 = vld [vmem:[%s3 + $0x24] sm:$0xf]
        %v294 = vld [vmem:[%s3 + $0x28] sm:$0xf]
        %v295 = vld [vmem:[%s3 + $0x2c] sm:$0xf]
        %v296 = vld [vmem:[%s3 + $0x30] sm:$0xf]
        %v297 = vld [vmem:[%s3 + $0x34] sm:$0xf]
        %v298 = vld [vmem:[%s3 + $0x38] sm:$0xf]
        %v299 = vld [vmem:[%s3 + $0x3c] sm:$0xf]
        %v300 = vld [vmem:[%s3 + $0x40] sm:$0xf]
        %v301 = vld [vmem:[%s3 + $0x44] sm:$0xf]
        %v302 = vld [vmem:[%s3 + $0x48] sm:$0xf]
        %v303 = vld [vmem:[%s3 + $0x4c] sm:$0xf]
        %v304 = vld [vmem:[%s3 + $0x50] sm:$0xf]
        %v305 = vld [vmem:[%s3 + $0x54] sm:$0xf]
        %v306 = vld [vmem:[%s3 + $0x58] sm:$0xf]
        %v307 = vld [vmem:[%s3 + $0x5c] sm:$0xf]
        %v308 = vld [vmem:[%s3 + $0x60] sm:$0xf]
        %v309 = vld [vmem:[%s3 + $0x64] sm:$0xf]
        %v310 = vld [vmem:[%s3 + $0x68] sm:$0xf]
        %v311 = vld [vmem:[%s3 + $0x6c] sm:$0xf]
        %v312 = vld [vmem:[%s3 + $0x70] sm:$0xf]
        %v313 = vld [vmem:[%s3 + $0x74] sm:$0xf]
        %v314 = vld [vmem:[%s3 + $0x78] sm:$0xf]
        %v315 = vld [vmem:[%s3 + $0x7c] sm:$0xf]
        %v316 = vld [vmem:[%s2] sm:$0xf]
        %318 = vset.pattern.permute.xlu0 0
        %319 = vperm.xlu0 %318, %v316
        %v320 = vpop.permute.xlu0 %319
        %v354 = vunpack.c.l.b16 %v284
        %v355 = vunpack.c.l.b16 %v285
        %v356 = vunpack.c.l.b16 %v286
        %v357 = vunpack.c.l.b16 %v287
        %v358 = vunpack.c.l.b16 %v288
        %v359 = vunpack.c.l.b16 %v289
        %v360 = vunpack.c.l.b16 %v290
        %v361 = vunpack.c.l.b16 %v291
        %v362 = vunpack.c.l.b16 %v292
        %v363 = vunpack.c.l.b16 %v293
        %v364 = vunpack.c.l.b16 %v294
        %v365 = vunpack.c.l.b16 %v295
        %v366 = vunpack.c.l.b16 %v296
        %v367 = vunpack.c.l.b16 %v297
        %v368 = vunpack.c.l.b16 %v298
        %v369 = vunpack.c.l.b16 %v299
        %v370 = vunpack.c.l.b16 %v300
        %v371 = vunpack.c.l.b16 %v301
        %v372 = vunpack.c.l.b16 %v302
        %v373 = vunpack.c.l.b16 %v303
        %v374 = vunpack.c.l.b16 %v304
        %v375 = vunpack.c.l.b16 %v305
        %v376 = vunpack.c.l.b16 %v306
        %v377 = vunpack.c.l.b16 %v307
        %v378 = vunpack.c.l.b16 %v308
        %v379 = vunpack.c.l.b16 %v309
        %v380 = vunpack.c.l.b16 %v310
        %v381 = vunpack.c.l.b16 %v311
        %v382 = vunpack.c.l.b16 %v312
        %v383 = vunpack.c.l.b16 %v313
        %v384 = vunpack.c.l.b16 %v314
        %v385 = vunpack.c.l.b16 %v315
        %v386 = vpack.c.b16 %v355, %v354
        %v387 = vpack.c.b16 %v357, %v356
        %v388 = vpack.c.b16 %v359, %v358
        %v389 = vpack.c.b16 %v361, %v360
        %v390 = vpack.c.b16 %v363, %v362
        %v391 = vpack.c.b16 %v365, %v364
        %v392 = vpack.c.b16 %v367, %v366
        %v393 = vpack.c.b16 %v369, %v368
        %v394 = vpack.c.b16 %v371, %v370
        %v395 = vpack.c.b16 %v373, %v372
        %v396 = vpack.c.b16 %v375, %v374
        %v397 = vpack.c.b16 %v377, %v376
        %v398 = vpack.c.b16 %v379, %v378
        %v399 = vpack.c.b16 %v381, %v380
        %v400 = vpack.c.b16 %v383, %v382
        %v401 = vpack.c.b16 %v385, %v384
        %418 = vmatprep.subr.bf16.mxu0 0
        %419 = vmatpush1.bf16.msra.mxu0 %v393
        %420 = vmatprep.subr.bf16.mxu0 0
        %421 = vmatpush1.bf16.msra.mxu0 %v392
        %422 = vmatprep.subr.bf16.mxu0 0
        %423 = vmatpush1.bf16.msra.mxu0 %v391
        %424 = vmatprep.subr.bf16.mxu0 0
        %425 = vmatpush1.bf16.msra.mxu0 %v390
        %426 = vmatprep.subr.bf16.mxu0 0
        %427 = vmatpush1.bf16.msra.mxu0 %v389
        %428 = vmatprep.subr.bf16.mxu0 0
        %429 = vmatpush1.bf16.msra.mxu0 %v388
        %430 = vmatprep.subr.bf16.mxu0 0
        %431 = vmatpush1.bf16.msra.mxu0 %v387
        %432 = vmatprep.subr.bf16.mxu0 0
        %433 = vmatpush1.bf16.msra.mxu0 %v386
        %434 = vmatprep.subr.bf16.mxu0 0
        %435 = vmatpush2.bf16.msra.mxu0 %v401
        %436 = vmatprep.subr.bf16.mxu0 0
        %437 = vmatpush2.bf16.msra.mxu0 %v400
        %438 = vmatprep.subr.bf16.mxu0 0
        %439 = vmatpush2.bf16.msra.mxu0 %v399
        %440 = vmatprep.subr.bf16.mxu0 0
        %441 = vmatpush2.bf16.msra.mxu0 %v398
        %442 = vmatprep.subr.bf16.mxu0 0
        %443 = vmatpush2.bf16.msra.mxu0 %v397
        %444 = vmatprep.subr.bf16.mxu0 0
        %445 = vmatpush2.bf16.msra.mxu0 %v396
        %446 = vmatprep.subr.bf16.mxu0 0
        %447 = vmatpush2.bf16.msra.mxu0 %v395
        %448 = vmatprep.subr.bf16.mxu0 0
        %449 = vmatpush2.bf16.msra.mxu0 %v394
        %450 = vmatprep.mubr.bf16.mxu0 %v283
        %451 = vmatmul.mubr.bf16.gmra.mxu0 %v282
        %v452 = vpop.f32.mrf.mxu0
        %v453 = vadd.f32 %v320, %v452
        %v454 = vpop.f32.mrf.mxu0
        %v455 = vpop.f32.mrf.mxu0
        %v456 = vpop.f32.mrf.mxu0
        %457 = vdwg.mxu0
        %v458 = vlaneseq
        %vm459 = vcmp.ge.s32.totalorder %v458, 0
        %vm460 = vcmp.lt.s32.totalorder %v458, 64
        %vm461 = vmand %vm459, %vm460
        %462 = vst.msk [vmem:[%s217] sm:$0x1] %vm461, %v453
        %v465 = vunpack.c.l.s4 1966171168
        %v466 = vunpack.c.0.s8 %v465
        %v467 = vlaneseq
        %v468 = vshrl.u32 %v467, 7
        %v469 = vsub.s32 %v466, %v468
        %v470 = vrot.slane %v453, %v469
        %v471 = vcombine.high %v470, %v470
        %v473 = vunpack.c.l.s4 1966171168
        %v474 = vunpack.c.0.s8 %v473
        %v475 = vlaneseq
        %v476 = vshrl.u32 %v475, 7
        %v477 = vsub.s32 %v474, %v476
        %v478 = vrot.slane %v470, %v477
        %v480 = vunpack.c.l.s4 1966171168
        %v481 = vunpack.c.0.s8 %v480
        %v482 = vlaneseq
        %v483 = vshrl.u32 %v482, 7
        %v484 = vsub.s32 %v481, %v483
        %v485 = vrot.slane %v471, %v484
        %486 = vrot.lane.b32.xlu0 %v485, 64
        %v487 = vpop.permute.xlu0 %486
        %vm489 = vcmp.ge.s32.totalorder %v458, 64
        %vm490 = vcmp.lt.s32.totalorder %v458, 128
        %vm491 = vmand %vm489, %vm490
        %492 = vst.msk [vmem:[%s217] sm:$0x1] %vm491, %v487
        %v493 = vcombine.high %v478, %v478
        %495 = vst.msk [vmem:[%s217 + $0x1] sm:$0x1] %vm461, %v493
        %v496 = vcombine.high %v485, %v485
        %497 = vrot.lane.b32.xlu0 %v496, 64
        %v498 = vpop.permute.xlu0 %497
        %500 = vst.msk [vmem:[%s217 + $0x1] sm:$0x1] %vm491, %v498
        %v501 = vld [vmem:[%s4] sm:$0xf]
        %v502 = vld [vmem:[%s4 + $0x4] sm:$0xf]
        %v503 = vld [vmem:[%s4 + $0x8] sm:$0xf]
        %v504 = vld [vmem:[%s4 + $0xc] sm:$0xf]
        %v505 = vld [vmem:[%s4 + $0x10] sm:$0xf]
        %v506 = vld [vmem:[%s4 + $0x14] sm:$0xf]
        %v507 = vld [vmem:[%s4 + $0x18] sm:$0xf]
        %v508 = vld [vmem:[%s4 + $0x1c] sm:$0xf]
        %v509 = vld [vmem:[%s4 + $0x20] sm:$0xf]
        %v510 = vld [vmem:[%s4 + $0x24] sm:$0xf]
        %v511 = vld [vmem:[%s4 + $0x28] sm:$0xf]
        %v512 = vld [vmem:[%s4 + $0x2c] sm:$0xf]
        %v513 = vld [vmem:[%s4 + $0x30] sm:$0xf]
        %v514 = vld [vmem:[%s4 + $0x34] sm:$0xf]
        %v515 = vld [vmem:[%s4 + $0x38] sm:$0xf]
        %v516 = vld [vmem:[%s4 + $0x3c] sm:$0xf]
        %v517 = vld [vmem:[%s4 + $0x40] sm:$0xf]
        %v518 = vld [vmem:[%s4 + $0x44] sm:$0xf]
        %v519 = vld [vmem:[%s4 + $0x48] sm:$0xf]
        %v520 = vld [vmem:[%s4 + $0x4c] sm:$0xf]
        %v521 = vld [vmem:[%s4 + $0x50] sm:$0xf]
        %v522 = vld [vmem:[%s4 + $0x54] sm:$0xf]
        %v523 = vld [vmem:[%s4 + $0x58] sm:$0xf]
        %v524 = vld [vmem:[%s4 + $0x5c] sm:$0xf]
        %v525 = vld [vmem:[%s4 + $0x60] sm:$0xf]
        %v526 = vld [vmem:[%s4 + $0x64] sm:$0xf]
        %v527 = vld [vmem:[%s4 + $0x68] sm:$0xf]
        %v528 = vld [vmem:[%s4 + $0x6c] sm:$0xf]
        %v529 = vld [vmem:[%s4 + $0x70] sm:$0xf]
        %v530 = vld [vmem:[%s4 + $0x74] sm:$0xf]
        %v531 = vld [vmem:[%s4 + $0x78] sm:$0xf]
        %v532 = vld [vmem:[%s4 + $0x7c] sm:$0xf]
        %v533 = vld [vmem:[%s2 + $0x4] sm:$0xf]
        %535 = vset.pattern.permute.xlu0 0
        %536 = vperm.xlu0 %535, %v533
        %v537 = vpop.permute.xlu0 %536
        %v541 = vrot.slane %v282, 2
        %v542 = vrot.slane %v283, 2
        %v577 = vunpack.c.l.b16 %v501
        %v578 = vunpack.c.l.b16 %v502
        %v579 = vunpack.c.l.b16 %v503
        %v580 = vunpack.c.l.b16 %v504
        %v581 = vunpack.c.l.b16 %v505
        %v582 = vunpack.c.l.b16 %v506
        %v583 = vunpack.c.l.b16 %v507
        %v584 = vunpack.c.l.b16 %v508
        %v585 = vunpack.c.l.b16 %v509
        %v586 = vunpack.c.l.b16 %v510
        %v587 = vunpack.c.l.b16 %v511
        %v588 = vunpack.c.l.b16 %v512
        %v589 = vunpack.c.l.b16 %v513
        %v590 = vunpack.c.l.b16 %v514
        %v591 = vunpack.c.l.b16 %v515
        %v592 = vunpack.c.l.b16 %v516
        %v593 = vunpack.c.l.b16 %v517
        %v594 = vunpack.c.l.b16 %v518
        %v595 = vunpack.c.l.b16 %v519
        %v596 = vunpack.c.l.b16 %v520
        %v597 = vunpack.c.l.b16 %v521
        %v598 = vunpack.c.l.b16 %v522
        %v599 = vunpack.c.l.b16 %v523
        %v600 = vunpack.c.l.b16 %v524
        %v601 = vunpack.c.l.b16 %v525
        %v602 = vunpack.c.l.b16 %v526
        %v603 = vunpack.c.l.b16 %v527
        %v604 = vunpack.c.l.b16 %v528
        %v605 = vunpack.c.l.b16 %v529
        %v606 = vunpack.c.l.b16 %v530
        %v607 = vunpack.c.l.b16 %v531
        %v608 = vunpack.c.l.b16 %v532
        %v609 = vpack.c.b16 %v578, %v577
        %v610 = vpack.c.b16 %v580, %v579
        %v611 = vpack.c.b16 %v582, %v581
        %v612 = vpack.c.b16 %v584, %v583
        %v613 = vpack.c.b16 %v586, %v585
        %v614 = vpack.c.b16 %v588, %v587
        %v615 = vpack.c.b16 %v590, %v589
        %v616 = vpack.c.b16 %v592, %v591
        %v617 = vpack.c.b16 %v594, %v593
        %v618 = vpack.c.b16 %v596, %v595
        %v619 = vpack.c.b16 %v598, %v597
        %v620 = vpack.c.b16 %v600, %v599
        %v621 = vpack.c.b16 %v602, %v601
        %v622 = vpack.c.b16 %v604, %v603
        %v623 = vpack.c.b16 %v606, %v605
        %v624 = vpack.c.b16 %v608, %v607
        %641 = vmatprep.subr.bf16.mxu0 0
        %642 = vmatpush1.bf16.msra.mxu0 %v616
        %643 = vmatprep.subr.bf16.mxu0 0
        %644 = vmatpush1.bf16.msra.mxu0 %v615
        %645 = vmatprep.subr.bf16.mxu0 0
        %646 = vmatpush1.bf16.msra.mxu0 %v614
        %647 = vmatprep.subr.bf16.mxu0 0
        %648 = vmatpush1.bf16.msra.mxu0 %v613
        %649 = vmatprep.subr.bf16.mxu0 0
        %650 = vmatpush1.bf16.msra.mxu0 %v612
        %651 = vmatprep.subr.bf16.mxu0 0
        %652 = vmatpush1.bf16.msra.mxu0 %v611
        %653 = vmatprep.subr.bf16.mxu0 0
        %654 = vmatpush1.bf16.msra.mxu0 %v610
        %655 = vmatprep.subr.bf16.mxu0 0
        %656 = vmatpush1.bf16.msra.mxu0 %v609
        %657 = vmatprep.subr.bf16.mxu0 0
        %658 = vmatpush2.bf16.msra.mxu0 %v624
        %659 = vmatprep.subr.bf16.mxu0 0
        %660 = vmatpush2.bf16.msra.mxu0 %v623
        %661 = vmatprep.subr.bf16.mxu0 0
        %662 = vmatpush2.bf16.msra.mxu0 %v622
        %663 = vmatprep.subr.bf16.mxu0 0
        %664 = vmatpush2.bf16.msra.mxu0 %v621
        %665 = vmatprep.subr.bf16.mxu0 0
        %666 = vmatpush2.bf16.msra.mxu0 %v620
        %667 = vmatprep.subr.bf16.mxu0 0
        %668 = vmatpush2.bf16.msra.mxu0 %v619
        %669 = vmatprep.subr.bf16.mxu0 0
        %670 = vmatpush2.bf16.msra.mxu0 %v618
        %671 = vmatprep.subr.bf16.mxu0 0
        %672 = vmatpush2.bf16.msra.mxu0 %v617
        %673 = vmatprep.mubr.bf16.mxu0 %v542
        %674 = vmatmul.mubr.bf16.gmra.mxu0 %v541
        %v675 = vpop.f32.mrf.mxu0
        %v676 = vadd.f32 %v537, %v675
        %v677 = vpop.f32.mrf.mxu0
        %v678 = vpop.f32.mrf.mxu0
        %v679 = vpop.f32.mrf.mxu0
        %680 = vdwg.mxu0
        %vm681 = vcmp.lt.s32.totalorder %v458, 16
        %vm682 = vmand %vm459, %vm681
        %683 = vst.msk [vmem:[%s217 + $0x2] sm:$0x1] %vm682, %v676
        %v686 = vunpack.c.l.s4 1966171168
        %v687 = vunpack.c.0.s8 %v686
        %v688 = vlaneseq
        %v689 = vshrl.u32 %v688, 7
        %v690 = vsub.s32 %v687, %v689
        %v691 = vrot.slane %v676, %v690
        %v692 = vcombine.high %v691, %v691
        %v694 = vunpack.c.l.s4 1966171168
        %v695 = vunpack.c.0.s8 %v694
        %v696 = vlaneseq
        %v697 = vshrl.u32 %v696, 7
        %v698 = vsub.s32 %v695, %v697
        %v699 = vrot.slane %v691, %v698
        %v701 = vunpack.c.l.s4 1966171168
        %v702 = vunpack.c.0.s8 %v701
        %v703 = vlaneseq
        %v704 = vshrl.u32 %v703, 7
        %v705 = vsub.s32 %v702, %v704
        %v706 = vrot.slane %v692, %v705
        %707 = vrot.lane.b32.xlu0 %v706, 16
        %v708 = vpop.permute.xlu0 %707
        %vm710 = vcmp.ge.s32.totalorder %v458, 16
        %vm711 = vcmp.lt.s32.totalorder %v458, 32
        %vm712 = vmand %vm710, %vm711
        %713 = vst.msk [vmem:[%s217 + $0x2] sm:$0x1] %vm712, %v708
        %v714 = vcombine.high %v699, %v699
        %715 = vrot.lane.b32.xlu0 %v714, 32
        %v716 = vpop.permute.xlu0 %715
        %vm718 = vcmp.ge.s32.totalorder %v458, 32
        %vm719 = vcmp.lt.s32.totalorder %v458, 48
        %vm720 = vmand %vm718, %vm719
        %721 = vst.msk [vmem:[%s217 + $0x2] sm:$0x1] %vm720, %v716
        %v722 = vcombine.high %v706, %v706
        %723 = vrot.lane.b32.xlu0 %v722, 48
        %v724 = vpop.permute.xlu0 %723
        %vm726 = vcmp.ge.s32.totalorder %v458, 48
        %vm727 = vmand %vm726, %vm460
        %728 = vst.msk [vmem:[%s217 + $0x2] sm:$0x1] %vm727, %v724
        %s729 = sand.u32 %s137, 1
        %s730 = scalar_lea.sflag [#allocation3], %s729
        %s731 = sand.u32 %s137, 1
        %s732 = smul.addr %s731, 3
        %s733 = scalar_lea.vmem [#allocation2], %s732
        // Predicated region
        $region41: #{tpu_custom_call.1} parent=39 // pred_check
          %p734 = pneg %p147
        $region42: #{tpu_custom_call.1} parent=39 // pred_check_branch
          %736 = sbr.rel (%p734) target = $region44
        $region43: #{tpu_custom_call.1} parent=39 // pred_region
          %s738 = ssub.s32 48, 48
          %739 = vsyncadd %s730, %s738
          %s740 = smul.addr %s19, 3
          %s741 = smul.addr %s740, 16
          %s742 = scalar_lea.hbm %s5, %s741
          %s744 = sshll.u32 %s733, 4
          %s745 = int_to_ptr.vmem [resolvable:$true] %s744
          %747 = dma.vmem_to_hbm [thread:$0]  %s745, 48, %s742, %s730
        $region44: #{tpu_custom_call.1} parent=39 // pred_fallthru
          _
      $region40: #{tpu_custom_call.1} parent=5 // pred_fallthru
        _
      %p748 = scmp.le.s32.totalorder 2, %s14
      // Predicated region
      $region45: #{tpu_custom_call.1} parent=5 // pred_check
        %p749 = pneg %p748
      $region46: #{tpu_custom_call.1} parent=5 // pred_check_branch
        %751 = sbr.rel (%p749) target = $region48
      $region47: #{tpu_custom_call.1} parent=5 // pred_region
        %s752 = ssub.s32 %s14, 2
        // Predicated region
        $region49: #{tpu_custom_call.1} parent=47 // pred_check
          %p753 = pneg %p153
        $region50: #{tpu_custom_call.1} parent=47 // pred_check_branch
          %755 = sbr.rel (%p753) target = $region52
        $region51: #{tpu_custom_call.1} parent=47 // pred_region
          %s756 = sand.u32 %s138, 1
          %s757 = scalar_lea.sflag [#allocation3], %s756
          %s758 = sand.u32 %s138, 1
          %s759 = smul.addr %s758, 3
          %s760 = scalar_lea.vmem [#allocation2], %s759
          %761 = dma.done %s757, 48
        $region52: #{tpu_custom_call.1} parent=47 // pred_fallthru
          _
      $region48: #{tpu_custom_call.1} parent=5 // pred_fallthru
        _
    $region6: #{tpu_custom_call.1} parent=1 // loop_footer
      %s18 = sadd.s32 1, %s14
    $region7: #{tpu_custom_call.1} parent=1 // loop_footer_branch
      %13 = sbr.rel target = $region3
    $region8: #{tpu_custom_call.1} parent=1 // loop_exit
      _
    %762 = vsyncpa [#allocation3], 1
    %s763 = scalar_lea.sflag [#allocation3], 1
    %764 = vsyncpa %s763, 1

</llo_original>
